<compile_context>
chip_gen: v6e
topology: v6e:2x2x1
jax: 0.10.0
libtpu: 0.0.40
codegen_flags: <defaults>
</compile_context>

<pallas_src>
import jax
import jax.numpy as jnp
from jax.experimental import pallas as pl
from jax.experimental.pallas import tpu as pltpu


def _round_up(x: int, m: int) -> int:
    return (x + m - 1) // m * m


def encoder_rnn_kernel(tok_ref, emb_hbm, h0_ref, w_ref, bias_ref,
                       out_ref, xh_ref, sem):
    """One embedding row-gather + one fused tanh-RNN step.

    tok_ref : SMEM (B,) int32 token ids. Contract (same as nn.Embedding):
              ids must lie in [0, V); out-of-range ids are undefined.
    emb_hbm : HBM  (V, E_pad) f32 embedding table (never copied wholesale).
    h0_ref  : VMEM (B_pad, H_pad) f32 previous hidden state (padded, rows/cols
              beyond B/H are zero).
    w_ref   : VMEM (E_pad + H_pad, H_pad) bf16 fused [W_ih^T ; W_hh^T].
    bias_ref: VMEM (1, H_pad) f32 fused bias (b_ih + b_hh).
    out_ref : VMEM (B_pad, H_pad) f32 new hidden state (== output).
    xh_ref  : VMEM scratch (B_pad, E_pad + H_pad) f32 fused matmul operand.
    sem     : (B,) DMA semaphores, one per gathered row.
    """
    B = tok_ref.shape[0]
    B_pad, K_pad = xh_ref.shape
    H_pad = w_ref.shape[1]
    E_pad = K_pad - H_pad

    # 1) Gather exactly the B needed embedding rows straight from HBM into the
    #    x-half of the fused operand (no intermediate x scratch, no copy pass).
    #    B is small and static -> fully unrolled.  (For B >~ 32, cap the unroll
    #    and/or share a semaphore to avoid descriptor-issue serialization.)
    copies = []
    for i in range(B):
        cp = pltpu.make_async_copy(
            emb_hbm.at[pl.ds(tok_ref[i], 1)],                # (1, E_pad) src
            xh_ref.at[pl.ds(i, 1), pl.ds(0, E_pad)],         # (1, E_pad) dst
            sem.at[i])
        cp.start()
        copies.append(cp)

    # 2) Work that does not depend on the gather, issued while the DMAs are in
    #    flight.  The regions written here are disjoint from the DMA
    #    destinations (h-columns for all rows; x-columns of padding rows only).
    xh_ref[:, pl.ds(E_pad, H_pad)] = h0_ref[...]
    if B < B_pad:
        xh_ref[pl.ds(B, B_pad - B), pl.ds(0, E_pad)] = jnp.zeros(
            (B_pad - B, E_pad), xh_ref.dtype)

    for cp in copies:
        cp.wait()

    # 3) One fused MXU push (K = E_pad + H_pad) with bf16 operands / f32
    #    accumulation, then f32 bias-add + tanh (EUP), single lane-dense store.
    acc = jnp.dot(xh_ref[...].astype(w_ref.dtype), w_ref[...],
                  preferred_element_type=jnp.float32)
    out_ref[...] = jnp.tanh(acc + bias_ref[...])


def prepare_params(params, *, batch_size: int):
    """One-time parameter prep -- hoisted out of the per-step path.

    Returns (prepped, dims) where `prepped` holds device arrays reused every
    step and `dims` holds the static Python ints the step function needs.
    """
    V, E = params["embedding"].shape
    H = params["w_hh"].shape[0]

    B = int(batch_size)
    B_pad = _round_up(max(B, 1), 8)     # sublane multiple
    E_pad = _round_up(E, 128)           # lane multiple (MXU + dense stores)
    H_pad = _round_up(H, 128)
    K_pad = E_pad + H_pad

    # Embedding table: pad lane dim once, keep f32 in HBM (clean row DMAs).
    emb = jnp.zeros((V, E_pad), jnp.float32).at[:, :E].set(
        params["embedding"].astype(jnp.float32))

    # Fused, padded, pre-transposed, bf16 weights and a single fused bias.
    w = jnp.zeros((K_pad, H_pad), jnp.float32)
    w = w.at[:E, :H].set(params["w_ih"].T)
    w = w.at[E_pad:E_pad + H, :H].set(params["w_hh"].T)
    w = w.astype(jnp.bfloat16)

    bias = jnp.zeros((1, H_pad), jnp.float32).at[0, :H].set(
        params["b_ih"] + params["b_hh"])

    prepped = {"emb": emb, "w": w, "bias": bias}
    dims = {"B": B, "B_pad": B_pad, "E": E, "E_pad": E_pad,
            "H": H, "H_pad": H_pad, "K_pad": K_pad, "V": V}
    return prepped, dims


def make_step_fn(dims):
    """Build the jitted single-step function operating on the PADDED hidden
    state (B_pad, H_pad); this is the thing to call in a decode loop so the
    hidden state never gets sliced/re-padded between steps."""
    B, B_pad = dims["B"], dims["B_pad"]
    H_pad, K_pad = dims["H_pad"], dims["K_pad"]

    @jax.jit
    def step(tokens, h_padded, emb, w, bias):
        return pl.pallas_call(
            encoder_rnn_kernel,
            out_shape=jax.ShapeDtypeStruct((B_pad, H_pad), jnp.float32),
            in_specs=[
                pl.BlockSpec(memory_space=pltpu.MemorySpace.SMEM),   # token ids
                pl.BlockSpec(memory_space=pl.ANY),                   # emb (HBM)
                pl.BlockSpec(memory_space=pltpu.MemorySpace.VMEM),   # h padded
                pl.BlockSpec(memory_space=pltpu.MemorySpace.VMEM),   # fused W bf16
                pl.BlockSpec(memory_space=pltpu.MemorySpace.VMEM),   # fused bias
            ],
            out_specs=pl.BlockSpec(memory_space=pltpu.MemorySpace.VMEM),
            scratch_shapes=[
                pltpu.VMEM((B_pad, K_pad), jnp.float32),             # [x | h]
                pltpu.SemaphoreType.DMA((B,)),
            ],
        )(tokens.astype(jnp.int32), emb, h_padded, w, bias)

    return step


def encoder_rnn_forward(tokens, hidden, prepped, dims, step_fn):
    """PyTorch-shaped wrapper: tokens (B,), hidden (1, B, H) -> (output, hidden),
    both (1, B, H).  Pads the hidden state once on entry and slices once on
    exit; a multi-step driver should instead carry the padded state and call
    `step_fn` directly each step."""
    B, H = dims["B"], dims["H"]
    B_pad, H_pad = dims["B_pad"], dims["H_pad"]
    h_padded = jnp.zeros((B_pad, H_pad), jnp.float32).at[:B, :H].set(
        hidden.reshape(B, H).astype(jnp.float32))
    h_new_padded = step_fn(tokens, h_padded,
                           prepped["emb"], prepped["w"], prepped["bias"])
    y = h_new_padded[:B, :H].reshape(1, B, H)
    return y, y                 # output == hidden for a 1-step, 1-layer RNN


def init_params(key, *, input_size, embedding_size, hidden_size):
    """Deterministic parameter init mirroring PyTorch defaults:
    Embedding ~ N(0,1); RNN weights/biases ~ U(-1/sqrt(H), 1/sqrt(H))."""
    k_emb, k_wih, k_whh, k_bih, k_bhh = jax.random.split(key, 5)
    bound = 1.0 / float(jnp.sqrt(hidden_size))
    return {
        "embedding": jax.random.normal(k_emb, (input_size, embedding_size),
                                       jnp.float32),
        "w_ih": jax.random.uniform(k_wih, (hidden_size, embedding_size),
                                   jnp.float32, -bound, bound),
        "w_hh": jax.random.uniform(k_whh, (hidden_size, hidden_size),
                                   jnp.float32, -bound, bound),
        "b_ih": jax.random.uniform(k_bih, (hidden_size,),
                                   jnp.float32, -bound, bound),
        "b_hh": jax.random.uniform(k_bhh, (hidden_size,),
                                   jnp.float32, -bound, bound),
    }


def reference_forward(tokens, hidden, params, *, matmul_dtype=jnp.float32):
    """Pure-JAX reference of the PyTorch forward. With matmul_dtype=bfloat16 it
    reproduces the kernel's numerics (bf16 operands, f32 accumulation)."""
    x = params["embedding"][tokens]                               # (B, E) f32
    h = hidden[0]                                                 # (B, H) f32
    w_ih = params["w_ih"].astype(matmul_dtype)
    w_hh = params["w_hh"].astype(matmul_dtype)
    pre = (jnp.dot(x.astype(matmul_dtype), w_ih.T,
                   preferred_element_type=jnp.float32)
           + jnp.dot(h.astype(matmul_dtype), w_hh.T,
                     preferred_element_type=jnp.float32)
           + params["b_ih"] + params["b_hh"])
    h_new = jnp.tanh(pre)
    return h_new[None], h_new[None]


if __name__ == "__main__":
    INPUT_SIZE = 16       # vocab
    EMBEDDING_SIZE = 32
    HIDDEN_SIZE = 32
    BATCH = 2

    key = jax.random.PRNGKey(0)
    k_params, k_tok = jax.random.split(key)

    params = init_params(k_params, input_size=INPUT_SIZE,
                         embedding_size=EMBEDDING_SIZE,
                         hidden_size=HIDDEN_SIZE)

    tokens = jax.random.randint(k_tok, (BATCH,), 0, INPUT_SIZE, jnp.int32)
    hidden0 = jnp.zeros((1, BATCH, HIDDEN_SIZE), jnp.float32)   # init_hidden()

    # --- one-time prep (hoisted out of the per-step path) ---
    prepped, dims = prepare_params(params, batch_size=BATCH)
    prepped = jax.tree_util.tree_map(jax.block_until_ready, prepped)
    step_fn = make_step_fn(dims)

    output, hidden = encoder_rnn_forward(tokens, hidden0, prepped, dims, step_fn)
    jax.block_until_ready((output, hidden))

    # Matched-precision reference (bf16 operands, f32 accumulation): tight check.
    ref_bf16, _ = reference_forward(tokens, hidden0, params,
                                    matmul_dtype=jnp.bfloat16)
    # Full-f32 PyTorch-equivalent reference: loose check (bf16 weight rounding only).
    ref_f32, _ = reference_forward(tokens, hidden0, params,
                                   matmul_dtype=jnp.float32)

    assert output.shape == (1, BATCH, HIDDEN_SIZE)
    assert hidden.shape == (1, BATCH, HIDDEN_SIZE)
    assert jnp.allclose(output, hidden)
    assert jnp.allclose(output, ref_bf16, atol=1e-4, rtol=1e-4), \
        float(jnp.abs(output - ref_bf16).max())
    assert jnp.allclose(output, ref_f32, atol=1e-2, rtol=1e-2), \
        float(jnp.abs(output - ref_f32).max())

    print("KERNEL_OK")
</pallas_src>

<mosaic_0001>
module attributes {stable_mosaic.version = 11 : i64} {
  func.func @encoder_rnn_kernel(%arg0: memref<2xi32, #tpu.memory_space<smem>>, %arg1: memref<16x128xf32, #tpu.memory_space<any>>, %arg2: memref<8x128xf32, #tpu.memory_space<vmem>>, %arg3: memref<256x128xbf16, #tpu.memory_space<vmem>>, %arg4: memref<1x128xf32, #tpu.memory_space<vmem>>, %arg5: memref<8x128xf32, #tpu.memory_space<vmem>>, %arg6: memref<8x256xf32, #tpu.memory_space<vmem>>, %arg7: memref<2x!tpu.dma_semaphore, #tpu.memory_space<semaphore_mem>>) attributes {dimension_semantics = [], scalar_prefetch = 0 : i64, scratch_operands = 2 : i64, tpu.core_type = #tpu.core_type<tc>} {
    %c0 = arith.constant 0 : index
    %0 = memref.load %arg0[%c0] : memref<2xi32, #tpu.memory_space<smem>>
    %c0_i32 = arith.constant 0 : i32
    %c0_i32_0 = arith.constant 0 : i32
    %1 = tpu.memref_slice %arg1[%0, %c0_i32_0] : memref<16x128xf32, #tpu.memory_space<any>> -> memref<1x128xf32, #tpu.memory_space<any>>
    %c0_i32_1 = arith.constant 0 : i32
    %c0_i32_2 = arith.constant 0 : i32
    %2 = tpu.memref_slice %arg6[%c0_i32_1, %c0_i32_2] : memref<8x256xf32, #tpu.memory_space<vmem>> -> memref<1x128xf32, #tpu.memory_space<vmem>>
    %3 = tpu.memref_slice %arg7[%c0_i32] : memref<2x!tpu.dma_semaphore, #tpu.memory_space<semaphore_mem>> -> memref<1x!tpu.dma_semaphore, #tpu.memory_space<semaphore_mem>>
    %4 = tpu.memref_squeeze %3 : memref<1x!tpu.dma_semaphore, #tpu.memory_space<semaphore_mem>> -> memref<!tpu.dma_semaphore, #tpu.memory_space<semaphore_mem>>
    tpu.enqueue_dma source(%1 : memref<1x128xf32, #tpu.memory_space<any>>) target(%2 : memref<1x128xf32, #tpu.memory_space<vmem>>) target_semaphore(%4 : memref<!tpu.dma_semaphore, #tpu.memory_space<semaphore_mem>>)
    %c1 = arith.constant 1 : index
    %5 = memref.load %arg0[%c1] : memref<2xi32, #tpu.memory_space<smem>>
    %c1_i32 = arith.constant 1 : i32
    %c0_i32_3 = arith.constant 0 : i32
    %6 = tpu.memref_slice %arg1[%5, %c0_i32_3] : memref<16x128xf32, #tpu.memory_space<any>> -> memref<1x128xf32, #tpu.memory_space<any>>
    %c1_i32_4 = arith.constant 1 : i32
    %c0_i32_5 = arith.constant 0 : i32
    %7 = tpu.memref_slice %arg6[%c1_i32_4, %c0_i32_5] : memref<8x256xf32, #tpu.memory_space<vmem>> -> memref<1x128xf32, #tpu.memory_space<vmem>>
    %8 = tpu.memref_slice %arg7[%c1_i32] : memref<2x!tpu.dma_semaphore, #tpu.memory_space<semaphore_mem>> -> memref<1x!tpu.dma_semaphore, #tpu.memory_space<semaphore_mem>>
    %9 = tpu.memref_squeeze %8 : memref<1x!tpu.dma_semaphore, #tpu.memory_space<semaphore_mem>> -> memref<!tpu.dma_semaphore, #tpu.memory_space<semaphore_mem>>
    tpu.enqueue_dma source(%6 : memref<1x128xf32, #tpu.memory_space<any>>) target(%7 : memref<1x128xf32, #tpu.memory_space<vmem>>) target_semaphore(%9 : memref<!tpu.dma_semaphore, #tpu.memory_space<semaphore_mem>>)
    %c0_6 = arith.constant 0 : index
    %c0_7 = arith.constant 0 : index
    %10 = vector.load %arg2[%c0_6, %c0_7] : memref<8x128xf32, #tpu.memory_space<vmem>>, vector<8x128xf32>
    %c0_8 = arith.constant 0 : index
    %c128 = arith.constant 128 : index
    %11 = vector.load %arg6[%c0_8, %c128] : memref<8x256xf32, #tpu.memory_space<vmem>>, vector<8x128xf32>
    tpu.vector_store %arg6[%c0_8, %c128], %10 {strides = array<i32>} : memref<8x256xf32, #tpu.memory_space<vmem>>, vector<8x128xf32>,
    %cst = arith.constant 0.000000e+00 : f32
    %12 = vector.broadcast %cst : f32 to vector<6x128xf32>
    %c2 = arith.constant 2 : index
    %c0_9 = arith.constant 0 : index
    %13 = vector.load %arg6[%c2, %c0_9] : memref<8x256xf32, #tpu.memory_space<vmem>>, vector<6x128xf32>
    tpu.vector_store %arg6[%c2, %c0_9], %12 {strides = array<i32>} : memref<8x256xf32, #tpu.memory_space<vmem>>, vector<6x128xf32>,
    %c0_i32_10 = arith.constant 0 : i32
    %c0_i32_11 = arith.constant 0 : i32
    %14 = tpu.memref_slice %arg1[%0, %c0_i32_11] : memref<16x128xf32, #tpu.memory_space<any>> -> memref<1x128xf32, #tpu.memory_space<any>>
    %c0_i32_12 = arith.constant 0 : i32
    %c0_i32_13 = arith.constant 0 : i32
    %15 = tpu.memref_slice %arg6[%c0_i32_12, %c0_i32_13] : memref<8x256xf32, #tpu.memory_space<vmem>> -> memref<1x128xf32, #tpu.memory_space<vmem>>
    %16 = tpu.memref_slice %arg7[%c0_i32_10] : memref<2x!tpu.dma_semaphore, #tpu.memory_space<semaphore_mem>> -> memref<1x!tpu.dma_semaphore, #tpu.memory_space<semaphore_mem>>
    %17 = tpu.memref_squeeze %16 : memref<1x!tpu.dma_semaphore, #tpu.memory_space<semaphore_mem>> -> memref<!tpu.dma_semaphore, #tpu.memory_space<semaphore_mem>>
    tpu.wait_dma2 semaphore(%17 : memref<!tpu.dma_semaphore, #tpu.memory_space<semaphore_mem>>) src(%14 : memref<1x128xf32, #tpu.memory_space<any>>) dst(%15 : memref<1x128xf32, #tpu.memory_space<vmem>>)
    %c1_i32_14 = arith.constant 1 : i32
    %c0_i32_15 = arith.constant 0 : i32
    %18 = tpu.memref_slice %arg1[%5, %c0_i32_15] : memref<16x128xf32, #tpu.memory_space<any>> -> memref<1x128xf32, #tpu.memory_space<any>>
    %c1_i32_16 = arith.constant 1 : i32
    %c0_i32_17 = arith.constant 0 : i32
    %19 = tpu.memref_slice %arg6[%c1_i32_16, %c0_i32_17] : memref<8x256xf32, #tpu.memory_space<vmem>> -> memref<1x128xf32, #tpu.memory_space<vmem>>
    %20 = tpu.memref_slice %arg7[%c1_i32_14] : memref<2x!tpu.dma_semaphore, #tpu.memory_space<semaphore_mem>> -> memref<1x!tpu.dma_semaphore, #tpu.memory_space<semaphore_mem>>
    %21 = tpu.memref_squeeze %20 : memref<1x!tpu.dma_semaphore, #tpu.memory_space<semaphore_mem>> -> memref<!tpu.dma_semaphore, #tpu.memory_space<semaphore_mem>>
    tpu.wait_dma2 semaphore(%21 : memref<!tpu.dma_semaphore, #tpu.memory_space<semaphore_mem>>) src(%18 : memref<1x128xf32, #tpu.memory_space<any>>) dst(%19 : memref<1x128xf32, #tpu.memory_space<vmem>>)
    %c0_18 = arith.constant 0 : index
    %c0_19 = arith.constant 0 : index
    %22 = vector.load %arg6[%c0_18, %c0_19] : memref<8x256xf32, #tpu.memory_space<vmem>>, vector<8x256xf32>
    %23 = arith.truncf %22 : vector<8x256xf32> to vector<8x256xbf16>
    %c0_20 = arith.constant 0 : index
    %c0_21 = arith.constant 0 : index
    %24 = vector.load %arg3[%c0_20, %c0_21] : memref<256x128xbf16, #tpu.memory_space<vmem>>, vector<256x128xbf16>
    %cst_22 = arith.constant dense<0.000000e+00> : vector<8x128xf32>
    %25 = tpu.matmul %23, %24, %cst_22 {dimension_numbers = #tpu.dot_dimension_numbers<[1], [0], [0], [1], [0, 0, 1, 1], [], []>} : vector<8x256xbf16>, vector<256x128xbf16>, vector<8x128xf32> -> vector<8x128xf32>
    %c0_23 = arith.constant 0 : index
    %c0_24 = arith.constant 0 : index
    %26 = vector.load %arg4[%c0_23, %c0_24] : memref<1x128xf32, #tpu.memory_space<vmem>>, vector<1x128xf32>
    %27 = vector.broadcast %26 : vector<1x128xf32> to vector<8x128xf32>
    %28 = arith.addf %25, %27 : vector<8x128xf32>
    %29 = math.tanh %28 : vector<8x128xf32>
    %c0_25 = arith.constant 0 : index
    %c0_26 = arith.constant 0 : index
    %30 = vector.load %arg5[%c0_25, %c0_26] : memref<8x128xf32, #tpu.memory_space<vmem>>, vector<8x128xf32>
    tpu.vector_store %arg5[%c0_25, %c0_26], %29 {strides = array<i32>} : memref<8x128xf32, #tpu.memory_space<vmem>>, vector<8x128xf32>,
    return
  }
}

</mosaic_0001>

<llo_original>
// kernel: step.1
$region0: #{step.1}
  #allocation0 [shape = 'u32[]', space=smem, size = 0x4, offset = 0x4, fixed_abs, tag = 'smem constant byte address 0x4 - core index']
  #allocation1 [shape = 'u32[144,128]{1,0:T(1,128)}', space=vmem, size = 0x12000, scoped, tag = 'internal scratch']
  #allocation2 [shape = 'f32[8,256]{1,0:T(8,128)}', space=vmem, size = 0x2000, scoped, tag = 'scratch operand']
  #allocation3 [shape = 's32[2]{0}', space=sflag, size = 0x8, scoped, tag = 'scratch operand']
  #allocation12 [shape = 's32[]', space=sflag, size = 0x4, offset = 0, fixed_abs, tag = 'sflag constant byte address 0x0 - dummy sync flag']
  #allocation13 [shape = 's32[]', space=sflag, size = 0x4, offset = 0, fixed_abs, tag = 'sflag constant byte address 0x0 - dummy sync flag']
  #allocation14 [shape = 'u32[]', space=smem, size = 0x4, offset = 0x44, fixed_abs, tag = 'smem constant byte address 0x44 - assertion arg 0']
  #allocation15 [shape = 'u32[]', space=smem, size = 0x4, offset = 0x48, fixed_abs, tag = 'smem constant byte address 0x48 - assertion arg 1']
  #allocation16 [shape = 's32[]', space=sflag, size = 0x4, offset = 0, fixed_abs, tag = 'sflag constant byte address 0x0 - dummy sync flag']
  #allocation17 [shape = 's32[]', space=sflag, size = 0x4, offset = 0, fixed_abs, tag = 'sflag constant byte address 0x0 - dummy sync flag']
  %s0 = inlined_call_operand.hbm [shape: s32[2], index: 0, kind: input, shape index: {}]
  %s1 = inlined_call_operand.hbm [shape: f32[16,128], index: 1, kind: input, shape index: {}]
  %s2 = inlined_call_operand.hbm [shape: f32[8,128], index: 2, kind: input, shape index: {}]
  %s3 = inlined_call_operand.hbm [shape: bf16[256,128], index: 3, kind: input, shape index: {}]
  %s4 = inlined_call_operand.vmem [shape: f32[1,128], index: 4, kind: input, shape index: {}]
  %s5 = inlined_call_operand.hbm [shape: f32[8,128], index: 5, kind: output, shape index: {}]
  %s6 = sld [smem:[#allocation0]]
  $region46: #{step.1} parent=0
    _
  %s8 = ssub.s32 1, %s6
  %s9 = scalar_select 0, %s8, %s6
  $region1: #{step.1} parent=0
    #allocation4 [shape = 'u8[512]{0}', space=smem, size = 0x200, scoped, tag = 'input window, operand 0, single buffered']
    #allocation5 [shape = 's32[1]{0}', space=sflag, size = 0x4, scoped, tag = 'scoped memory for step.1']
    #allocation6 [shape = 's32[1]{0}', space=sflag, size = 0x4, scoped, tag = 'scoped memory for step.1']
    #allocation7 [shape = 's32[1]{0}', space=sflag, size = 0x4, scoped, tag = 'scoped memory for step.1']
    #allocation8 [shape = 'u8[4096]{0}', space=vmem, size = 0x1000, scoped, tag = 'input window, operand 2, single buffered']
    #allocation9 [shape = 'u8[65536]{0}', space=vmem, size = 0x10000, scoped, tag = 'input window, operand 3, single buffered']
    #allocation10 [shape = 's32[1]{0}', space=sflag, size = 0x4, scoped, tag = 'scoped memory for step.1']
    #allocation11 [shape = 'u8[4096]{0}', space=vmem, size = 0x1000, scoped, tag = 'output window, operand 0, single buffered']
    %10 = vsyncpa [#allocation7], 0
    %11 = vsyncpa [#allocation5], 0
    %12 = vsyncpa [#allocation10], 0
    %13 = vsyncpa [#allocation6], 0
    // Predicated region
    $region2: #{step.1} parent=1 // pred_check
      _
    $region3: #{step.1} parent=1 // pred_check_branch
      %15 = sbr.rel (0) target = $region5
    $region4: #{step.1} parent=1 // pred_region
      %s17 = ssub.s32 16, 16
      %18 = vsyncadd [#allocation7], %s17
      %21 = dma.hbm_to_smem %s0, 16, [#allocation4], [#allocation7]
    $region5: #{step.1} parent=1 // pred_fallthru
      _
    // Predicated region
    $region6: #{step.1} parent=1 // pred_check
      _
    $region7: #{step.1} parent=1 // pred_check_branch
      %23 = sbr.rel (0) target = $region9
    $region8: #{step.1} parent=1 // pred_region
      %s25 = ssub.s32 128, 128
      %26 = vsyncadd [#allocation5], %s25
      %s28 = sshll.u32 [#allocation8], 4
      %s29 = int_to_ptr.vmem [resolvable:$true] %s28
      %31 = dma.hbm_to_vmem [thread:$0]  %s2, 128, %s29, [#allocation5]
    $region9: #{step.1} parent=1 // pred_fallthru
      _
    // Predicated region
    $region10: #{step.1} parent=1 // pred_check
      _
    $region11: #{step.1} parent=1 // pred_check_branch
      %33 = sbr.rel (0) target = $region13
    $region12: #{step.1} parent=1 // pred_region
      %s35 = ssub.s32 2048, 2048
      %36 = vsyncadd [#allocation10], %s35
      %s37 = sshll.u32 [#allocation9], 4
      %s38 = int_to_ptr.vmem [resolvable:$true] %s37
      %43 = dma.hbm_to_vmem [thread:$0]  %s3, 2048, %s38, [#allocation10], 64, 64, 4
    $region13: #{step.1} parent=1 // pred_fallthru
      _
    // Predicated region
    $region14: #{step.1} parent=1 // pred_check
      _
    $region15: #{step.1} parent=1 // pred_check_branch
      %45 = sbr.rel (0) target = $region17
    $region16: #{step.1} parent=1 // pred_region
      _
    $region17: #{step.1} parent=1 // pred_fallthru
      _
    // Predicated region
    $region18: #{step.1} parent=1 // pred_check
      _
    $region19: #{step.1} parent=1 // pred_check_branch
      %47 = sbr.rel (0) target = $region21
    $region20: #{step.1} parent=1 // pred_region
      %48 = dma.done [#allocation7], 16
    $region21: #{step.1} parent=1 // pred_fallthru
      _
    // Predicated region
    $region22: #{step.1} parent=1 // pred_check
      _
    $region23: #{step.1} parent=1 // pred_check_branch
      %50 = sbr.rel (0) target = $region25
    $region24: #{step.1} parent=1 // pred_region
      %51 = dma.done [#allocation5], 128
    $region25: #{step.1} parent=1 // pred_fallthru
      _
    // Predicated region
    $region26: #{step.1} parent=1 // pred_check
      _
    $region27: #{step.1} parent=1 // pred_check_branch
      %53 = sbr.rel (0) target = $region29
    $region28: #{step.1} parent=1 // pred_region
      %54 = dma.done [#allocation10], 2048
    $region29: #{step.1} parent=1 // pred_fallthru
      _
    %55 = sfence
    %s57 = sld [smem:[#allocation4]]
    %s58 = smul.addr %s57, 16
    %s59 = scalar_lea.hbm %s1, %s58
    // Predicated region
    $region30: #{step.1} parent=1 // pred_check
      _
    $region31: #{step.1} parent=1 // pred_check_branch
      %61 = sbr.rel target = $region33
    $region32: #{step.1} parent=1 // pred_region
      %62 = sst [smem:[#allocation14]] [#allocation13]
      %63 = sst [smem:[#allocation15]] [#allocation12]
    $region33: #{step.1} parent=1 // pred_fallthru
      _
    %65 = shalt.err (0)
    %s67 = sshll.u32 [#allocation2], 4
    %s68 = int_to_ptr.vmem [resolvable:$true] %s67
    %70 = dma.hbm_to_vmem [thread:$0]  %s59, 16, %s68, [#allocation3]
    %s71 = sld [smem:[#allocation4 + $0x1]]
    %s72 = smul.addr %s71, 16
    %s73 = scalar_lea.hbm %s1, %s72
    %s74 = scalar_lea.vmem [#allocation2], 1
    %s75 = scalar_lea.sflag [#allocation3], 1
    // Predicated region
    $region34: #{step.1} parent=1 // pred_check
      _
    $region35: #{step.1} parent=1 // pred_check_branch
      %77 = sbr.rel target = $region37
    $region36: #{step.1} parent=1 // pred_region
      %78 = sst [smem:[#allocation14]] [#allocation17]
      %79 = sst [smem:[#allocation15]] [#allocation16]
    $region37: #{step.1} parent=1 // pred_fallthru
      _
    %81 = shalt.err (0)
    %s83 = sshll.u32 %s74, 4
    %s84 = int_to_ptr.vmem [resolvable:$true] %s83
    %86 = dma.hbm_to_vmem [thread:$0]  %s73, 16, %s84, %s75
    %v87 = vld [vmem:[#allocation8] sm:$0xff]
    %88 = vst [vmem:[#allocation2 + $0x8] sm:$0xff] %v87
    %89 = vst [vmem:[#allocation2] sm:$0xfc] 0.0
    %s90 = smul.u32 1, 1
    %s91 = sshll.u32 %s90, 4
    %92 = dma.done [#allocation3], %s91
    %s93 = sshll.u32 %s90, 4
    %94 = dma.done %s75, %s93
    %v95 = vld [vmem:[#allocation2] sm:$0xff]
    %v96 = vld [vmem:[#allocation2 + $0x8] sm:$0xff]
    %v97 = vpack.c.bf16 %v95, %v95
    %v98 = vpack.c.bf16 %v96, %v96
    %v99 = vld [vmem:[#allocation9] sm:$0xf]
    %v100 = vld [vmem:[#allocation9 + $0x4] sm:$0xf]
    %v101 = vld [vmem:[#allocation9 + $0x8] sm:$0xf]
    %v102 = vld [vmem:[#allocation9 + $0xc] sm:$0xf]
    %v103 = vld [vmem:[#allocation9 + $0x10] sm:$0xf]
    %v104 = vld [vmem:[#allocation9 + $0x14] sm:$0xf]
    %v105 = vld [vmem:[#allocation9 + $0x18] sm:$0xf]
    %v106 = vld [vmem:[#allocation9 + $0x1c] sm:$0xf]
    %v107 = vld [vmem:[#allocation9 + $0x20] sm:$0xf]
    %v108 = vld [vmem:[#allocation9 + $0x24] sm:$0xf]
    %v109 = vld [vmem:[#allocation9 + $0x28] sm:$0xf]
    %v110 = vld [vmem:[#allocation9 + $0x2c] sm:$0xf]
    %v111 = vld [vmem:[#allocation9 + $0x30] sm:$0xf]
    %v112 = vld [vmem:[#allocation9 + $0x34] sm:$0xf]
    %v113 = vld [vmem:[#allocation9 + $0x38] sm:$0xf]
    %v114 = vld [vmem:[#allocation9 + $0x3c] sm:$0xf]
    %v115 = vld [vmem:[#allocation9 + $0x40] sm:$0xf]
    %v116 = vld [vmem:[#allocation9 + $0x44] sm:$0xf]
    %v117 = vld [vmem:[#allocation9 + $0x48] sm:$0xf]
    %v118 = vld [vmem:[#allocation9 + $0x4c] sm:$0xf]
    %v119 = vld [vmem:[#allocation9 + $0x50] sm:$0xf]
    %v120 = vld [vmem:[#allocation9 + $0x54] sm:$0xf]
    %v121 = vld [vmem:[#allocation9 + $0x58] sm:$0xf]
    %v122 = vld [vmem:[#allocation9 + $0x5c] sm:$0xf]
    %v123 = vld [vmem:[#allocation9 + $0x60] sm:$0xf]
    %v124 = vld [vmem:[#allocation9 + $0x64] sm:$0xf]
    %v125 = vld [vmem:[#allocation9 + $0x68] sm:$0xf]
    %v126 = vld [vmem:[#allocation9 + $0x6c] sm:$0xf]
    %v127 = vld [vmem:[#allocation9 + $0x70] sm:$0xf]
    %v128 = vld [vmem:[#allocation9 + $0x74] sm:$0xf]
    %v129 = vld [vmem:[#allocation9 + $0x78] sm:$0xf]
    %v130 = vld [vmem:[#allocation9 + $0x7c] sm:$0xf]
    %v131 = vld [vmem:[%s4] sm:$0x1]
    %v133 = vlaneseq
    %v134 = vshrl.u32 %v133, 7
    %v135 = vsub.s32 0, %v134
    %v136 = vrot.slane %v131, %v135
    %v170 = vunpack.c.l.b16 %v99
    %v171 = vunpack.c.l.b16 %v100
    %v172 = vunpack.c.l.b16 %v101
    %v173 = vunpack.c.l.b16 %v102
    %v174 = vunpack.c.l.b16 %v103
    %v175 = vunpack.c.l.b16 %v104
    %v176 = vunpack.c.l.b16 %v105
    %v177 = vunpack.c.l.b16 %v106
    %v178 = vunpack.c.l.b16 %v107
    %v179 = vunpack.c.l.b16 %v108
    %v180 = vunpack.c.l.b16 %v109
    %v181 = vunpack.c.l.b16 %v110
    %v182 = vunpack.c.l.b16 %v111
    %v183 = vunpack.c.l.b16 %v112
    %v184 = vunpack.c.l.b16 %v113
    %v185 = vunpack.c.l.b16 %v114
    %v186 = vunpack.c.l.b16 %v115
    %v187 = vunpack.c.l.b16 %v116
    %v188 = vunpack.c.l.b16 %v117
    %v189 = vunpack.c.l.b16 %v118
    %v190 = vunpack.c.l.b16 %v119
    %v191 = vunpack.c.l.b16 %v120
    %v192 = vunpack.c.l.b16 %v121
    %v193 = vunpack.c.l.b16 %v122
    %v194 = vunpack.c.l.b16 %v123
    %v195 = vunpack.c.l.b16 %v124
    %v196 = vunpack.c.l.b16 %v125
    %v197 = vunpack.c.l.b16 %v126
    %v198 = vunpack.c.l.b16 %v127
    %v199 = vunpack.c.l.b16 %v128
    %v200 = vunpack.c.l.b16 %v129
    %v201 = vunpack.c.l.b16 %v130
    %v202 = vpack.c.b16 %v171, %v170
    %v203 = vpack.c.b16 %v173, %v172
    %v204 = vpack.c.b16 %v175, %v174
    %v205 = vpack.c.b16 %v177, %v176
    %v206 = vpack.c.b16 %v179, %v178
    %v207 = vpack.c.b16 %v181, %v180
    %v208 = vpack.c.b16 %v183, %v182
    %v209 = vpack.c.b16 %v185, %v184
    %v210 = vpack.c.b16 %v187, %v186
    %v211 = vpack.c.b16 %v189, %v188
    %v212 = vpack.c.b16 %v191, %v190
    %v213 = vpack.c.b16 %v193, %v192
    %v214 = vpack.c.b16 %v195, %v194
    %v215 = vpack.c.b16 %v197, %v196
    %v216 = vpack.c.b16 %v199, %v198
    %v217 = vpack.c.b16 %v201, %v200
    %234 = vmatprep.subr.bf16.mxu0 0
    %235 = vmatpush1.bf16.msra.mxu0 %v209
    %236 = vmatprep.subr.bf16.mxu0 0
    %237 = vmatpush1.bf16.msra.mxu0 %v208
    %238 = vmatprep.subr.bf16.mxu0 0
    %239 = vmatpush1.bf16.msra.mxu0 %v207
    %240 = vmatprep.subr.bf16.mxu0 0
    %241 = vmatpush1.bf16.msra.mxu0 %v206
    %242 = vmatprep.subr.bf16.mxu0 0
    %243 = vmatpush1.bf16.msra.mxu0 %v205
    %244 = vmatprep.subr.bf16.mxu0 0
    %245 = vmatpush1.bf16.msra.mxu0 %v204
    %246 = vmatprep.subr.bf16.mxu0 0
    %247 = vmatpush1.bf16.msra.mxu0 %v203
    %248 = vmatprep.subr.bf16.mxu0 0
    %249 = vmatpush1.bf16.msra.mxu0 %v202
    %250 = vmatprep.subr.bf16.mxu0 0
    %251 = vmatpush2.bf16.msra.mxu0 %v217
    %252 = vmatprep.subr.bf16.mxu0 0
    %253 = vmatpush2.bf16.msra.mxu0 %v216
    %254 = vmatprep.subr.bf16.mxu0 0
    %255 = vmatpush2.bf16.msra.mxu0 %v215
    %256 = vmatprep.subr.bf16.mxu0 0
    %257 = vmatpush2.bf16.msra.mxu0 %v214
    %258 = vmatprep.subr.bf16.mxu0 0
    %259 = vmatpush2.bf16.msra.mxu0 %v213
    %260 = vmatprep.subr.bf16.mxu0 0
    %261 = vmatpush2.bf16.msra.mxu0 %v212
    %262 = vmatprep.subr.bf16.mxu0 0
    %263 = vmatpush2.bf16.msra.mxu0 %v211
    %264 = vmatprep.subr.bf16.mxu0 0
    %265 = vmatpush2.bf16.msra.mxu0 %v210
    %266 = vmatprep.mubr.bf16.mxu0 %v98
    %267 = vmatmul.mubr.bf16.gmra.mxu0 %v97
    %v268 = vpop.f32.mrf.mxu0
    %v269 = vadd.f32 %v136, %v268
    %v270 = vpop.f32.mrf.mxu0
    %v271 = vpop.f32.mrf.mxu0
    %v272 = vpop.f32.mrf.mxu0
    %273 = vdwg.mxu0
    %v274 = vtanh.pop %v269
    %275 = vst [vmem:[#allocation11] sm:$0xff] %v274
    // Predicated region
    $region38: #{step.1} parent=1 // pred_check
      _
    $region39: #{step.1} parent=1 // pred_check_branch
      %277 = sbr.rel (0) target = $region41
    $region40: #{step.1} parent=1 // pred_region
      %s279 = ssub.s32 128, 128
      %280 = vsyncadd [#allocation6], %s279
      %s282 = sshll.u32 [#allocation11], 4
      %s283 = int_to_ptr.vmem [resolvable:$true] %s282
      %285 = dma.vmem_to_hbm [thread:$0]  %s283, 128, %s5, [#allocation6]
    $region41: #{step.1} parent=1 // pred_fallthru
      _
    // Predicated region
    $region42: #{step.1} parent=1 // pred_check
      _
    $region43: #{step.1} parent=1 // pred_check_branch
      %287 = sbr.rel (0) target = $region45
    $region44: #{step.1} parent=1 // pred_region
      %288 = dma.done [#allocation6], 128
    $region45: #{step.1} parent=1 // pred_fallthru
      _
    %289 = vsyncpa [#allocation5], 1
    %290 = vsyncpa [#allocation10], 1
    %291 = vsyncpa [#allocation6], 1
    %292 = vsyncpa [#allocation7], 1
  %293 = vsyncmov [#allocation3]
  %s294 = vpop.sfrf %293
  %p295 = scmp.eq.s32.totalorder %s294, 0
  %p296 = pneg %p295
  %298 = shalt.err (%p296)
  %s299 = scalar_lea.sflag [#allocation3], 1
  %300 = vsyncmov %s299
  %s301 = vpop.sfrf %300
  %p302 = scmp.eq.s32.totalorder %s301, 0
  %p303 = pneg %p302
  %305 = shalt.err (%p303)

</llo_original>
